<compile_context>
chip_gen: v6e
topology: v6e:2x2x1
jax: 0.10.0
libtpu: 0.0.40
codegen_flags: <defaults>
</compile_context>

<pallas_src>
import jax
import jax.numpy as jnp
from jax.experimental import pallas as pl
from jax.experimental.pallas import tpu as pltpu


def fused_mlp_kernel(x_ref, w_ref, b_ref, o_ref, act_ref):
    # x_ref:   (M, Dp)      padded input, constant block across the layer grid
    # w_ref:   (Dp, Dp)     this layer's weight, already (in, out)
    # b_ref:   (1, Dp)      this layer's bias
    # o_ref:   (M, Dp)      final output (constant block index -> written once)
    # act_ref: (M, Dp) VMEM scratch holding the running activation
    l = pl.program_id(0)

    @pl.when(l == 0)
    def _():
        act_ref[...] = x_ref[...].astype(jnp.float32)

    y = jnp.dot(act_ref[...], w_ref[...], preferred_element_type=jnp.float32)
    y = jnp.maximum(y + b_ref[...], 0.0)
    act_ref[...] = y

    @pl.when(l == pl.num_programs(0) - 1)
    def _():
        o_ref[...] = y.astype(o_ref.dtype)


def fused_mlp(x_padded, w_stack, b_stack):
    """Run all layers in one pallas_call. Shapes:
       x_padded (M, Dp), w_stack (L, Dp, Dp), b_stack (L, 1, Dp)."""
    M, Dp = x_padded.shape
    L = w_stack.shape[0]
    return pl.pallas_call(
        fused_mlp_kernel,
        out_shape=jax.ShapeDtypeStruct((M, Dp), x_padded.dtype),
        grid=(L,),
        in_specs=[
            pl.BlockSpec((M, Dp), lambda l: (0, 0)),          # x: resident
            pl.BlockSpec((None, Dp, Dp), lambda l: (l, 0, 0)),  # W[l]
            pl.BlockSpec((None, 1, Dp), lambda l: (l, 0, 0)),   # b[l]
        ],
        out_specs=pl.BlockSpec((M, Dp), lambda l: (0, 0)),      # written once
        scratch_shapes=[pltpu.VMEM((M, Dp), jnp.float32)],
        compiler_params=pltpu.CompilerParams(
            dimension_semantics=("arbitrary",)),  # layer axis is a sequential dep
    )(x_padded, w_stack, b_stack)


def init_params(key, layers, dim, dtype=jnp.float32):
    """Deterministic init mimicking nn.Linear: weight (out, in), bias (out,)."""
    params = []
    for _ in range(layers):
        kw, kb, key = jax.random.split(key, 3)
        bound = 1.0 / jnp.sqrt(dim)
        w = jax.random.uniform(kw, (dim, dim), dtype, -bound, bound)  # (out, in)
        b = jax.random.uniform(kb, (dim,), dtype, -bound, bound)
        params.append((w, b))
    return params


def prepare_params(params, dim, dim_p):
    """One-time layout prep: transpose to (in, out), zero-pad to dim_p, stack."""
    ws, bs = [], []
    for w, b in params:
        w_t = jnp.zeros((dim_p, dim_p), w.dtype).at[:dim, :dim].set(w.T)
        b_p = jnp.zeros((1, dim_p), b.dtype).at[0, :dim].set(b)
        ws.append(w_t)
        bs.append(b_p)
    return jnp.stack(ws), jnp.stack(bs)  # (L, Dp, Dp), (L, 1, Dp)


@jax.jit
def dummy_model_forward(x, w_stack, b_stack):
    """Equivalent of DummyModel.forward: repeated Linear -> ReLU, fully fused."""
    M, dim = x.shape
    dim_p = w_stack.shape[-1]
    x_p = jnp.zeros((M, dim_p), x.dtype).at[:, :dim].set(x)
    out_p = fused_mlp(x_p, w_stack, b_stack)
    return out_p[:, :dim]


def reference_forward(x, params):
    for w, b in params:
        x = jnp.maximum(x @ w.T + b, 0.0)
    return x


if __name__ == "__main__":
    layers, dim, batch = 3, 32, 8
    dim_p = 128  # lane-dense padded feature width (multiple of 128)

    key = jax.random.PRNGKey(0)
    kx, kp = jax.random.split(key)
    x = jax.random.normal(kx, (batch, dim), jnp.float32)
    params = init_params(kp, layers, dim)

    # One-time parameter layout prep (transpose / pad / stack).
    w_stack, b_stack = prepare_params(params, dim, dim_p)

    out = dummy_model_forward(x, w_stack, b_stack)
    out = jax.block_until_ready(out)

    ref = reference_forward(x, params)
    assert out.shape == (batch, dim)
    assert jnp.allclose(out, ref, atol=1e-5, rtol=1e-5)

    print("KERNEL_OK")
</pallas_src>

<mosaic_0001>
module attributes {stable_mosaic.version = 11 : i64} {
  func.func @fused_mlp_kernel(%arg0: i32, %arg1: memref<8x128xf32, #tpu.memory_space<vmem>>, %arg2: memref<1x128x128xf32, #tpu.memory_space<vmem>>, %arg3: memref<1x1x128xf32, #tpu.memory_space<vmem>>, %arg4: memref<8x128xf32, #tpu.memory_space<vmem>>, %arg5: memref<8x128xf32, #tpu.memory_space<vmem>>) attributes {dimension_semantics = [#tpu.dimension_semantics<arbitrary>], iteration_bounds = array<i64: 3>, scalar_prefetch = 0 : i64, scratch_operands = 1 : i64, tpu.core_type = #tpu.core_type<tc>, window_params = [{pipeline_mode = #tpu.pipeline_mode<synchronous>, transform_indices = @transform_0, window_bounds = array<i64: 8, 128>}, {transform_indices = @transform_1, window_bounds = array<i64: 1, 128, 128>}, {transform_indices = @transform_2, window_bounds = array<i64: 1, 1, 128>}, {pipeline_mode = #tpu.pipeline_mode<synchronous>, transform_indices = @transform_3, window_bounds = array<i64: 8, 128>}]} {
    %c0_i32 = arith.constant 0 : i32
    %0 = arith.cmpi eq, %arg0, %c0_i32 : i32
    %1 = arith.extui %0 : i1 to i32
    %c0_i32_0 = arith.constant 0 : i32
    %2 = arith.cmpi ne, %1, %c0_i32_0 : i32
    scf.if %2 {
      %c0_12 = arith.constant 0 : index
      %c0_13 = arith.constant 0 : index
      %17 = vector.load %arg1[%c0_12, %c0_13] : memref<8x128xf32, #tpu.memory_space<vmem>>, vector<8x128xf32>
      %c0_14 = arith.constant 0 : index
      %c0_15 = arith.constant 0 : index
      %18 = vector.load %arg5[%c0_14, %c0_15] : memref<8x128xf32, #tpu.memory_space<vmem>>, vector<8x128xf32>
      tpu.vector_store %arg5[%c0_14, %c0_15], %17 {strides = array<i32>} : memref<8x128xf32, #tpu.memory_space<vmem>>, vector<8x128xf32>,
    } else {
    }
    %c0 = arith.constant 0 : index
    %c0_1 = arith.constant 0 : index
    %3 = vector.load %arg5[%c0, %c0_1] : memref<8x128xf32, #tpu.memory_space<vmem>>, vector<8x128xf32>
    %c0_2 = arith.constant 0 : index
    %c0_3 = arith.constant 0 : index
    %c0_4 = arith.constant 0 : index
    %4 = vector.load %arg2[%c0_2, %c0_3, %c0_4] : memref<1x128x128xf32, #tpu.memory_space<vmem>>, vector<1x128x128xf32>
    %5 = vector.shape_cast %4 : vector<1x128x128xf32> to vector<128x128xf32>
    %cst = arith.constant dense<0.000000e+00> : vector<8x128xf32>
    %6 = tpu.matmul %3, %5, %cst {dimension_numbers = #tpu.dot_dimension_numbers<[1], [0], [0], [1], [0, 0, 1, 1], [], []>} : vector<8x128xf32>, vector<128x128xf32>, vector<8x128xf32> -> vector<8x128xf32>
    %c0_5 = arith.constant 0 : index
    %c0_6 = arith.constant 0 : index
    %c0_7 = arith.constant 0 : index
    %7 = vector.load %arg3[%c0_5, %c0_6, %c0_7] : memref<1x1x128xf32, #tpu.memory_space<vmem>>, vector<1x1x128xf32>
    %8 = vector.shape_cast %7 : vector<1x1x128xf32> to vector<1x128xf32>
    %9 = vector.broadcast %8 : vector<1x128xf32> to vector<8x128xf32>
    %10 = arith.addf %6, %9 : vector<8x128xf32>
    %cst_8 = arith.constant 0.000000e+00 : f32
    %11 = vector.broadcast %cst_8 : f32 to vector<8x128xf32>
    %12 = arith.maximumf %10, %11 : vector<8x128xf32>
    %c0_9 = arith.constant 0 : index
    %c0_10 = arith.constant 0 : index
    %13 = vector.load %arg5[%c0_9, %c0_10] : memref<8x128xf32, #tpu.memory_space<vmem>>, vector<8x128xf32>
    tpu.vector_store %arg5[%c0_9, %c0_10], %12 {strides = array<i32>} : memref<8x128xf32, #tpu.memory_space<vmem>>, vector<8x128xf32>,
    %c2_i32 = arith.constant 2 : i32
    %14 = arith.cmpi eq, %arg0, %c2_i32 : i32
    %15 = arith.extui %14 : i1 to i32
    %c0_i32_11 = arith.constant 0 : i32
    %16 = arith.cmpi ne, %15, %c0_i32_11 : i32
    scf.if %16 {
      %c0_12 = arith.constant 0 : index
      %c0_13 = arith.constant 0 : index
      %17 = vector.load %arg4[%c0_12, %c0_13] : memref<8x128xf32, #tpu.memory_space<vmem>>, vector<8x128xf32>
      tpu.vector_store %arg4[%c0_12, %c0_13], %12 {strides = array<i32>} : memref<8x128xf32, #tpu.memory_space<vmem>>, vector<8x128xf32>,
    } else {
    }
    return
  }
  func.func @transform_0(%arg0: i32) -> (i32, i32) {
    %c0_i32 = arith.constant 0 : i32
    %c0_i32_0 = arith.constant 0 : i32
    %c0_i32_1 = arith.constant 0 : i32
    return %c0_i32, %c0_i32_0 : i32, i32
  }
  func.func @transform_1(%arg0: i32) -> (i32, i32, i32) {
    %c0_i32 = arith.constant 0 : i32
    %c0_i32_0 = arith.constant 0 : i32
    %c0_i32_1 = arith.constant 0 : i32
    return %arg0, %c0_i32, %c0_i32_0 : i32, i32, i32
  }
  func.func @transform_2(%arg0: i32) -> (i32, i32, i32) {
    %c0_i32 = arith.constant 0 : i32
    %c0_i32_0 = arith.constant 0 : i32
    %c0_i32_1 = arith.constant 0 : i32
    return %arg0, %c0_i32, %c0_i32_0 : i32, i32, i32
  }
  func.func @transform_3(%arg0: i32) -> (i32, i32) {
    %c0_i32 = arith.constant 0 : i32
    %c0_i32_0 = arith.constant 0 : i32
    %c0_i32_1 = arith.constant 0 : i32
    return %c0_i32, %c0_i32_0 : i32, i32
  }
}

</mosaic_0001>

<llo_original>
// kernel: dummy_model_forward.1
$region0: #{dummy_model_forward.1}
  #allocation0 [shape = 'u32[]', space=smem, size = 0x4, offset = 0x4, fixed_abs, tag = 'smem constant byte address 0x4 - core index']
  #allocation1 [shape = 'u32[144,128]{1,0:T(1,128)}', space=vmem, size = 0x12000, scoped, tag = 'internal scratch']
  #allocation2 [shape = 'f32[8,128]{1,0:T(8,128)}', space=vmem, size = 0x1000, scoped, tag = 'scratch operand']
  %s0 = inlined_call_operand.vmem [shape: f32[8,128], index: 0, kind: input, shape index: {}]
  %s1 = inlined_call_operand.hbm [shape: f32[3,128,128], index: 1, kind: input, shape index: {}]
  %s2 = inlined_call_operand.vmem [shape: f32[3,1,128], index: 2, kind: input, shape index: {}]
  %s3 = inlined_call_operand.hbm [shape: f32[8,128], index: 3, kind: output, shape index: {}]
  %s4 = sld [smem:[#allocation0]]
  $region57: #{dummy_model_forward.1} parent=0
    _
  %s6 = ssub.s32 1, %s4
  %s7 = scalar_select 0, %s6, %s4
  $region1: #{dummy_model_forward.1} parent=0
    #allocation3 [shape = 'u8[131072]{0}', space=vmem, size = 0x20000, scoped, tag = 'input window, operand 1']
    #allocation4 [shape = 's32[2]{0}', space=sflag, size = 0x8, scoped, tag = 'scoped memory for dummy_model_forward.1']
    #allocation5 [shape = 's32[2]{0}', space=sflag, size = 0x8, scoped, tag = 'scoped memory for dummy_model_forward.1']
    #allocation6 [shape = 'u8[4096]{0}', space=vmem, size = 0x1000, scoped, tag = 'output window, operand 0, single buffered']
    %8 = vsyncpa [#allocation4], 0
    %s9 = scalar_lea.sflag [#allocation4], 1
    %10 = vsyncpa %s9, 0
    %11 = vsyncpa [#allocation5], 0
    loop: start=0, step=1, limit=5
    $region2: #{dummy_model_forward.1} parent=1 // loop_pre_header
      _
    $region3: #{dummy_model_forward.1} parent=1 // loop_header
      %s13 = sphi 0, %s17
      %p14 = scmp.ge.s32.totalorder %s13, 5
      %s21 = sphi 0, %s21
      %s23 = sphi 0, %s21
      %s24 = sphi 0, %s23
      %s38 = sphi 0, %s24
      %s44 = sphi 0, %s46
      %s47 = sphi 0, %s44
      %s48 = sphi 0, %s47
      %s64 = sphi 0, %s48
      %s70 = sphi 0, %s72
      %s73 = sphi 0, %s70
      %s74 = sphi 0, %s73
      %s90 = sphi 0, %s74
      %s94 = sphi 0, %s94
      %s96 = sphi 0, %s94
      %s97 = sphi 0, %s96
      %s111 = sphi 0, %s97
    $region4: #{dummy_model_forward.1} parent=1 // loop_header_branch
      %16 = sbr.rel (%p14) target = $region8
    $region5: #{dummy_model_forward.1} parent=1 // loop_body
      %s18 = ssub.s32 %s13, 1
      %s19 = ssub.s32 %s13, 2
      %s20 = sadd.s32 %s13, 1
      %s22 = sadd.s32 %s21, 1
      %p25 = scmp.eq.s32.totalorder %s13, 2
      %p26 = scmp.ne.s32.totalorder %s21, %s23
      %p27 = scmp.eq.s32.totalorder %s13, 0
      %p28 = por %p26, %p27
      %p29 = scmp.ne.s32.totalorder %s21, %s23
      %p30 = scmp.eq.s32.totalorder %s18, 2
      %p31 = por %p29, %p30
      %p32 = scmp.ne.s32.totalorder %s23, %s24
      %p33 = scmp.eq.s32.totalorder %s18, 0
      %p34 = por %p32, %p33
      %p35 = scmp.ne.s32.totalorder %s23, %s24
      %p36 = scmp.eq.s32.totalorder %s19, 2
      %p37 = por %p35, %p36
      %p39 = scmp.ne.s32.totalorder %s24, %s38
      %p40 = scmp.eq.s32.totalorder %s19, 0
      %p41 = por %p39, %p40
      %s42 = ssub.s32 %s13, %s20
      %p43 = scmp.eq.s32.totalorder %s42, 0
      %s45 = sadd.s32 %s44, 1
      %s46 = scalar_select %p43, %s44, %s45
      %p49 = pneg %p43
      %p50 = scmp.eq.s32.totalorder %s13, 2
      %p51 = por %p49, %p50
      %p52 = scmp.ne.s32.totalorder %s44, %s47
      %p53 = scmp.eq.s32.totalorder %s13, 0
      %p54 = por %p52, %p53
      %p55 = scmp.ne.s32.totalorder %s44, %s47
      %p56 = scmp.eq.s32.totalorder %s18, 2
      %p57 = por %p55, %p56
      %p58 = scmp.ne.s32.totalorder %s47, %s48
      %p59 = scmp.eq.s32.totalorder %s18, 0
      %p60 = por %p58, %p59
      %p61 = scmp.ne.s32.totalorder %s47, %s48
      %p62 = scmp.eq.s32.totalorder %s19, 2
      %p63 = por %p61, %p62
      %p65 = scmp.ne.s32.totalorder %s48, %s64
      %p66 = scmp.eq.s32.totalorder %s19, 0
      %p67 = por %p65, %p66
      %s68 = ssub.s32 %s13, %s20
      %p69 = scmp.eq.s32.totalorder %s68, 0
      %s71 = sadd.s32 %s70, 1
      %s72 = scalar_select %p69, %s70, %s71
      %p75 = pneg %p69
      %p76 = scmp.eq.s32.totalorder %s13, 2
      %p77 = por %p75, %p76
      %p78 = scmp.ne.s32.totalorder %s70, %s73
      %p79 = scmp.eq.s32.totalorder %s13, 0
      %p80 = por %p78, %p79
      %p81 = scmp.ne.s32.totalorder %s70, %s73
      %p82 = scmp.eq.s32.totalorder %s18, 2
      %p83 = por %p81, %p82
      %p84 = scmp.ne.s32.totalorder %s73, %s74
      %p85 = scmp.eq.s32.totalorder %s18, 0
      %p86 = por %p84, %p85
      %p87 = scmp.ne.s32.totalorder %s73, %s74
      %p88 = scmp.eq.s32.totalorder %s19, 2
      %p89 = por %p87, %p88
      %p91 = scmp.ne.s32.totalorder %s74, %s90
      %p92 = scmp.eq.s32.totalorder %s19, 0
      %p93 = por %p91, %p92
      %s95 = sadd.s32 %s94, 1
      %p98 = scmp.eq.s32.totalorder %s13, 2
      %p99 = scmp.ne.s32.totalorder %s94, %s96
      %p100 = scmp.eq.s32.totalorder %s13, 0
      %p101 = por %p99, %p100
      %p102 = scmp.ne.s32.totalorder %s94, %s96
      %p103 = scmp.eq.s32.totalorder %s18, 2
      %p104 = por %p102, %p103
      %p105 = scmp.ne.s32.totalorder %s96, %s97
      %p106 = scmp.eq.s32.totalorder %s18, 0
      %p107 = por %p105, %p106
      %p108 = scmp.ne.s32.totalorder %s96, %s97
      %p109 = scmp.eq.s32.totalorder %s19, 2
      %p110 = por %p108, %p109
      %p112 = scmp.ne.s32.totalorder %s97, %s111
      %p113 = scmp.eq.s32.totalorder %s19, 0
      %p114 = por %p112, %p113
      %p115 = scmp.le.s32.totalorder 1, %s13
      %p116 = scmp.lt.s32.totalorder %s13, 4
      %p117 = pnand %p115, %p116
      %p118 = pneg %p117
      // Predicated region
      $region9: #{dummy_model_forward.1} parent=5 // pred_check
        _
      $region10: #{dummy_model_forward.1} parent=5 // pred_check_branch
        %120 = sbr.rel (%p117) target = $region12
      $region11: #{dummy_model_forward.1} parent=5 // pred_region
        %s121 = ssub.s32 %s13, 1
        // Predicated region
        $region13: #{dummy_model_forward.1} parent=11 // pred_check
          %p122 = pneg %p34
        $region14: #{dummy_model_forward.1} parent=11 // pred_check_branch
          %124 = sbr.rel (%p122) target = $region16
        $region15: #{dummy_model_forward.1} parent=11 // pred_region
          _
        $region16: #{dummy_model_forward.1} parent=11 // pred_fallthru
          _
      $region12: #{dummy_model_forward.1} parent=5 // pred_fallthru
        _
      %p125 = scmp.lt.s32.totalorder %s13, 3
      // Predicated region
      $region17: #{dummy_model_forward.1} parent=5 // pred_check
        %p126 = pneg %p125
      $region18: #{dummy_model_forward.1} parent=5 // pred_check_branch
        %128 = sbr.rel (%p126) target = $region20
      $region19: #{dummy_model_forward.1} parent=5 // pred_region
        // Predicated region
        $region21: #{dummy_model_forward.1} parent=19 // pred_check
          %p129 = pneg %p54
        $region22: #{dummy_model_forward.1} parent=19 // pred_check_branch
          %131 = sbr.rel (%p129) target = $region24
        $region23: #{dummy_model_forward.1} parent=19 // pred_region
          %s132 = sand.u32 %s44, 1
          %s133 = scalar_lea.sflag [#allocation4], %s132
          %s134 = sand.u32 %s44, 1
          %s135 = smul.addr %s134, 128
          %s136 = scalar_lea.vmem [#allocation3], %s135
          %s138 = ssub.s32 2048, 2048
          %139 = vsyncadd %s133, %s138
          %s140 = smul.addr %s13, 16
          %s141 = smul.addr %s140, 128
          %s142 = scalar_lea.hbm %s1, %s141
          %s143 = sshll.u32 %s136, 4
          %s144 = int_to_ptr.vmem [resolvable:$true] %s143
          %149 = dma.hbm_to_vmem [thread:$0]  %s142, 2048, %s144, %s133, 128, 128, 8
        $region24: #{dummy_model_forward.1} parent=19 // pred_fallthru
          _
        // Predicated region
        $region25: #{dummy_model_forward.1} parent=19 // pred_check
          %p150 = pneg %p80
        $region26: #{dummy_model_forward.1} parent=19 // pred_check_branch
          %152 = sbr.rel (%p150) target = $region28
        $region27: #{dummy_model_forward.1} parent=19 // pred_region
          %p153 = scmp.lt.s32.totalorder %s13, 2
          %s154 = scalar_select %p153, %s13, 2
          %s155 = scalar_lea.vmem %s2, %s154
        $region28: #{dummy_model_forward.1} parent=19 // pred_fallthru
          _
      $region20: #{dummy_model_forward.1} parent=5 // pred_fallthru
        _
      %p156 = scmp.le.s32.totalorder 1, %s13
      %p157 = scmp.lt.s32.totalorder %s13, 4
      %p158 = pnand %p156, %p157
      %p159 = pneg %p158
      // Predicated region
      $region29: #{dummy_model_forward.1} parent=5 // pred_check
        _
      $region30: #{dummy_model_forward.1} parent=5 // pred_check_branch
        %161 = sbr.rel (%p158) target = $region32
      $region31: #{dummy_model_forward.1} parent=5 // pred_region
        %s162 = ssub.s32 %s13, 1
        %s163 = sand.u32 %s47, 1
        %s164 = scalar_lea.sflag [#allocation4], %s163
        %s165 = sand.u32 %s47, 1
        %s166 = smul.addr %s165, 128
        %s167 = scalar_lea.vmem [#allocation3], %s166
        // Predicated region
        $region33: #{dummy_model_forward.1} parent=31 // pred_check
          %p168 = pneg %p60
        $region34: #{dummy_model_forward.1} parent=31 // pred_check_branch
          %170 = sbr.rel (%p168) target = $region36
        $region35: #{dummy_model_forward.1} parent=31 // pred_region
          %171 = dma.done %s164, 2048
        $region36: #{dummy_model_forward.1} parent=31 // pred_fallthru
          _
        %p172 = pneg %p34
        %p173 = pneg %p31
        %s174 = sand.u32 %s47, 1
        %s175 = scalar_lea.sflag [#allocation4], %s174
        %s176 = sand.u32 %s47, 1
        %s177 = smul.addr %s176, 128
        %s178 = scalar_lea.vmem [#allocation3], %s177
        %p179 = pneg %p60
        %p180 = pneg %p57
        %p181 = scmp.lt.s32.totalorder %s18, 2
        %s182 = scalar_select %p181, %s18, 2
        %s183 = scalar_lea.vmem %s2, %s182
        %p184 = pneg %p86
        %p185 = pneg %p83
        %p186 = pneg %p107
        %p187 = pneg %p104
        %p188 = scmp.lt.s32.totalorder %s18, 2
        %s189 = scalar_select %p188, %s18, 2
        %s190 = scalar_lea.vmem %s2, %s189
        %p191 = scmp.eq.s32.totalorder %s18, 0
        // Predicated region
        $region37: #{dummy_model_forward.1} parent=31 // pred_check
          %p192 = pneg %p191
        $region38: #{dummy_model_forward.1} parent=31 // pred_check_branch
          %194 = sbr.rel (%p192) target = $region40
        $region39: #{dummy_model_forward.1} parent=31 // pred_region
          %v195 = vld [vmem:[%s0] sm:$0xff]
          %196 = vst [vmem:[#allocation2] sm:$0xff] %v195
        $region40: #{dummy_model_forward.1} parent=31 // pred_fallthru
          _
        %v197 = vld [vmem:[#allocation2] sm:$0xff]
        %v198 = vld [vmem:[%s167] sm:$0xff]
        %v199 = vld [vmem:[%s167 + $0x8] sm:$0xff]
        %v200 = vld [vmem:[%s167 + $0x10] sm:$0xff]
        %v201 = vld [vmem:[%s167 + $0x18] sm:$0xff]
        %v202 = vld [vmem:[%s167 + $0x20] sm:$0xff]
        %v203 = vld [vmem:[%s167 + $0x28] sm:$0xff]
        %v204 = vld [vmem:[%s167 + $0x30] sm:$0xff]
        %v205 = vld [vmem:[%s167 + $0x38] sm:$0xff]
        %v206 = vld [vmem:[%s167 + $0x40] sm:$0xff]
        %v207 = vld [vmem:[%s167 + $0x48] sm:$0xff]
        %v208 = vld [vmem:[%s167 + $0x50] sm:$0xff]
        %v209 = vld [vmem:[%s167 + $0x58] sm:$0xff]
        %v210 = vld [vmem:[%s167 + $0x60] sm:$0xff]
        %v211 = vld [vmem:[%s167 + $0x68] sm:$0xff]
        %v212 = vld [vmem:[%s167 + $0x70] sm:$0xff]
        %v213 = vld [vmem:[%s167 + $0x78] sm:$0xff]
        %v214 = vld [vmem:[%s190] sm:$0x1]
        %v216 = vlaneseq
        %v217 = vshrl.u32 %v216, 7
        %v218 = vsub.s32 0, %v217
        %v219 = vrot.slane %v214, %v218
        %221 = vmatprep.subr.mxu0 0.0
        %222 = vmatpush1.msra.mxu0 %v213
        %223 = vmatprep.subr.mxu0 0.0
        %224 = vmatpush1.msra.mxu0 %v212
        %225 = vmatprep.subr.mxu0 0.0
        %226 = vmatpush1.msra.mxu0 %v211
        %227 = vmatprep.subr.mxu0 0.0
        %228 = vmatpush1.msra.mxu0 %v210
        %229 = vmatprep.subr.mxu0 0.0
        %230 = vmatpush1.msra.mxu0 %v209
        %231 = vmatprep.subr.mxu0 0.0
        %232 = vmatpush1.msra.mxu0 %v208
        %233 = vmatprep.subr.mxu0 0.0
        %234 = vmatpush1.msra.mxu0 %v207
        %235 = vmatprep.subr.mxu0 0.0
        %236 = vmatpush1.msra.mxu0 %v206
        %237 = vmatprep.subr.mxu0 0.0
        %238 = vmatpush1.msra.mxu0 %v205
        %239 = vmatprep.subr.mxu0 0.0
        %240 = vmatpush1.msra.mxu0 %v204
        %241 = vmatprep.subr.mxu0 0.0
        %242 = vmatpush1.msra.mxu0 %v203
        %243 = vmatprep.subr.mxu0 0.0
        %244 = vmatpush1.msra.mxu0 %v202
        %245 = vmatprep.subr.mxu0 0.0
        %246 = vmatpush1.msra.mxu0 %v201
        %247 = vmatprep.subr.mxu0 0.0
        %248 = vmatpush1.msra.mxu0 %v200
        %249 = vmatprep.subr.mxu0 0.0
        %250 = vmatpush1.msra.mxu0 %v199
        %251 = vmatprep.subr.mxu0 0.0
        %252 = vmatpush1.msra.mxu0 %v198
        %253 = vmatprep.subr.mxu0 0.0
        %254 = vmatpush2.msra.mxu0 0.0
        %255 = vmatprep.subr.mxu0 0.0
        %256 = vmatpush2.msra.mxu0 0.0
        %257 = vmatprep.subr.mxu0 0.0
        %258 = vmatpush2.msra.mxu0 0.0
        %259 = vmatprep.subr.mxu0 0.0
        %260 = vmatpush2.msra.mxu0 0.0
        %261 = vmatprep.subr.mxu0 0.0
        %262 = vmatpush2.msra.mxu0 0.0
        %263 = vmatprep.subr.mxu0 0.0
        %264 = vmatpush2.msra.mxu0 0.0
        %265 = vmatprep.subr.mxu0 0.0
        %266 = vmatpush2.msra.mxu0 0.0
        %267 = vmatprep.subr.mxu0 0.0
        %268 = vmatpush2.msra.mxu0 0.0
        %269 = vmatprep.subr.mxu0 0.0
        %270 = vmatpush2.msra.mxu0 0.0
        %271 = vmatprep.subr.mxu0 0.0
        %272 = vmatpush2.msra.mxu0 0.0
        %273 = vmatprep.subr.mxu0 0.0
        %274 = vmatpush2.msra.mxu0 0.0
        %275 = vmatprep.subr.mxu0 0.0
        %276 = vmatpush2.msra.mxu0 0.0
        %277 = vmatprep.subr.mxu0 0.0
        %278 = vmatpush2.msra.mxu0 0.0
        %279 = vmatprep.subr.mxu0 0.0
        %280 = vmatpush2.msra.mxu0 0.0
        %281 = vmatprep.subr.mxu0 0.0
        %282 = vmatpush2.msra.mxu0 0.0
        %283 = vmatprep.subr.mxu0 0.0
        %284 = vmatpush2.msra.mxu0 0.0
        %285 = vmatprep.mubr.f32.mxu0 0.0
        %286 = vmatmul.mubr.f32.gmra.mxu0 %v197
        %v287 = vpop.f32.mrf.mxu0
        %v288 = vadd.f32 %v219, %v287
        %v289 = vpop.f32.mrf.mxu0
        %290 = vdwg.mxu0
        %v291 = vmax.f32 %v288, 0.0
        %292 = vst [vmem:[#allocation2] sm:$0xff] %v291
        %p293 = scmp.eq.s32.totalorder %s18, 2
        // Predicated region
        $region41: #{dummy_model_forward.1} parent=31 // pred_check
          %p294 = pneg %p293
        $region42: #{dummy_model_forward.1} parent=31 // pred_check_branch
          %296 = sbr.rel (%p294) target = $region44
        $region43: #{dummy_model_forward.1} parent=31 // pred_region
          %297 = vst [vmem:[#allocation6] sm:$0xff] %v291
        $region44: #{dummy_model_forward.1} parent=31 // pred_fallthru
          _
        // Predicated region
        $region45: #{dummy_model_forward.1} parent=31 // pred_check
          %p298 = pneg %p104
        $region46: #{dummy_model_forward.1} parent=31 // pred_check_branch
          %300 = sbr.rel (%p298) target = $region48
        $region47: #{dummy_model_forward.1} parent=31 // pred_region
          %s302 = ssub.s32 128, 128
          %303 = vsyncadd [#allocation5], %s302
          %s305 = sshll.u32 [#allocation6], 4
          %s306 = int_to_ptr.vmem [resolvable:$true] %s305
          %308 = dma.vmem_to_hbm [thread:$0]  %s306, 128, %s3, [#allocation5]
        $region48: #{dummy_model_forward.1} parent=31 // pred_fallthru
          _
        // Predicated region
        $region49: #{dummy_model_forward.1} parent=31 // pred_check
          %p309 = pneg %p104
        $region50: #{dummy_model_forward.1} parent=31 // pred_check_branch
          %311 = sbr.rel (%p309) target = $region52
        $region51: #{dummy_model_forward.1} parent=31 // pred_region
          %312 = dma.done [#allocation5], 128
        $region52: #{dummy_model_forward.1} parent=31 // pred_fallthru
          _
      $region32: #{dummy_model_forward.1} parent=5 // pred_fallthru
        _
      %p313 = scmp.le.s32.totalorder 2, %s13
      // Predicated region
      $region53: #{dummy_model_forward.1} parent=5 // pred_check
        %p314 = pneg %p313
      $region54: #{dummy_model_forward.1} parent=5 // pred_check_branch
        %316 = sbr.rel (%p314) target = $region56
      $region55: #{dummy_model_forward.1} parent=5 // pred_region
        %s317 = ssub.s32 %s13, 2
      $region56: #{dummy_model_forward.1} parent=5 // pred_fallthru
        _
    $region6: #{dummy_model_forward.1} parent=1 // loop_footer
      %s17 = sadd.s32 1, %s13
    $region7: #{dummy_model_forward.1} parent=1 // loop_footer_branch
      %12 = sbr.rel target = $region3
    $region8: #{dummy_model_forward.1} parent=1 // loop_exit
      _
    %318 = vsyncpa [#allocation4], 1
    %s319 = scalar_lea.sflag [#allocation4], 1
    %320 = vsyncpa %s319, 1
    %321 = vsyncpa [#allocation5], 1
    %s322 = scalar_lea.sflag [#allocation5], 1
    %323 = vsyncpa %s322, 1

</llo_original>
